<compile_context>
chip_gen: v5e
topology: v5e:2x2
jax: 0.10.0
libtpu: 0.0.40
codegen_flags: <defaults>
</compile_context>

<pallas_src>
import functools

import jax
import jax.numpy as jnp
from jax.experimental import pallas as pl
from jax.experimental.pallas import tpu as pltpu

_LN_EPS = 1e-5  # torch.nn.LayerNorm default


def _mlp_kernel(meta, *refs):
    """One batch-tile of the full MLP forward; all parameters VMEM-resident (constant blocks).

    Ref order (presence controlled by trace-time flags in `meta`):
        x, [w0], [wstack], vecs, [w_last, b_last], out
    vecs rows: [b0, gamma0, beta0, b1, gamma1, beta1, ..., (b_last padded)] each (1, hidden).
    wstack    : stacked (hidden, hidden) slabs: [w0?] + hidden-layer weights + [w_last padded?].
    """
    nb_layers = meta["nb_layers"]
    nb_out = meta["nb_out"]

    idx = 0
    x_ref = refs[idx]; idx += 1
    w0_ref = None
    if not meta["fold_w0"]:
        w0_ref = refs[idx]; idx += 1
    wstack_ref = None
    if meta["has_wstack"]:
        wstack_ref = refs[idx]; idx += 1
    vecs_ref = refs[idx]; idx += 1
    wl_ref = bl_ref = None
    if not meta["fold_last"]:
        wl_ref = refs[idx]; idx += 1
        bl_ref = refs[idx]; idx += 1
    out_ref = refs[idx]

    h = x_ref[...]
    slab = 0
    for l in range(nb_layers + 1):
        if l == 0 and not meta["fold_w0"]:
            w = w0_ref[...]
        else:
            w = wstack_ref[slab]          # static first-axis index -> (hidden, hidden) load
            slab += 1
        b = vecs_ref[3 * l + 0: 3 * l + 1, :]
        g = vecs_ref[3 * l + 1: 3 * l + 2, :]
        be = vecs_ref[3 * l + 2: 3 * l + 3, :]
        h = jnp.dot(h, w, preferred_element_type=jnp.float32) + b
        # Torch-style two-pass LayerNorm (biased variance) for numerical parity.
        mu = jnp.mean(h, axis=-1, keepdims=True)
        var = jnp.mean((h - mu) ** 2, axis=-1, keepdims=True)
        h = (h - mu) * jax.lax.rsqrt(var + _LN_EPS) * g + be
        h = jnp.maximum(h, 0.0)           # ReLU

    if meta["fold_last"]:
        wl = wstack_ref[slab]             # (hidden, hidden), zero-padded cols beyond nb_out
        bl = vecs_ref[3 * (nb_layers + 1): 3 * (nb_layers + 1) + 1, :]
        y = jnp.dot(h, wl, preferred_element_type=jnp.float32) + bl
        y = y[:, :nb_out]                 # static slice of the valid output lanes
    else:
        y = jnp.dot(h, wl_ref[...], preferred_element_type=jnp.float32) + bl_ref[...]
    out_ref[...] = y.astype(out_ref.dtype)


def pack_params(params, nb_layers):
    """One-time packing of the module parameters into at most 3 DMA slabs (call outside the hot path)."""
    w0 = params["block0"][0]
    nb_in, hidden = w0.shape
    w_last, b_last = params["w_last"], params["b_last"]
    nb_out = w_last.shape[1]

    fold_w0 = (nb_in == hidden)           # w0 can live in the stacked slab
    fold_last = (nb_out <= hidden)        # w_last / b_last can be lane-padded into the slabs

    slabs = []
    if fold_w0:
        slabs.append(w0)
    slabs += [params[f"block{l}"][0] for l in range(1, nb_layers + 1)]
    if fold_last:
        slabs.append(jnp.pad(w_last, ((0, 0), (0, hidden - nb_out))))

    vec_rows = [v for l in range(nb_layers + 1) for v in params[f"block{l}"][1:]]
    if fold_last:
        vec_rows.append(jnp.pad(b_last, ((0, 0), (0, hidden - nb_out))))

    packed = {
        "wstack": jnp.stack(slabs) if slabs else None,
        "vecs": jnp.concatenate(vec_rows, axis=0),
        "w0": None if fold_w0 else w0,
        "w_last": None if fold_last else w_last,
        "b_last": None if fold_last else b_last,
    }
    meta = dict(
        nb_layers=nb_layers, nb_in=nb_in, hidden=hidden, nb_out=nb_out,
        fold_w0=fold_w0, fold_last=fold_last, has_wstack=len(slabs) > 0,
    )
    return packed, meta


def _pick_batch_tile(batch, max_batch_tile, min_split_batch):
    """Tiny batch: one grid step.  Larger batch: >=2 steps (v7x dual-TC), capped for overhead amortization."""
    if batch < min_split_batch:
        return batch
    half = -(-batch // 2)                 # ceil(batch / 2)
    half = ((half + 7) // 8) * 8          # sublane-aligned block rows
    return max(8, min(max_batch_tile, half))


def mlp_forward(x, packed, meta, *, max_batch_tile=16384, min_split_batch=512):
    """Pallas wrapper: returns MLP(x) with shape (batch, nb_outputs)."""
    batch, nb_in = x.shape
    nb_out = meta["nb_out"]

    tb = _pick_batch_tile(batch, max_batch_tile, min_split_batch)
    padded = pl.cdiv(batch, tb) * tb
    if padded != batch:
        x = jnp.pad(x, ((0, padded - batch), (0, 0)))

    args = [x]
    in_specs = [pl.BlockSpec((tb, nb_in), lambda i: (i, 0))]            # x: tiled on batch
    if not meta["fold_w0"]:
        args.append(packed["w0"])
        in_specs.append(pl.BlockSpec(packed["w0"].shape, lambda i: (0, 0)))
    if meta["has_wstack"]:
        args.append(packed["wstack"])
        in_specs.append(pl.BlockSpec(packed["wstack"].shape, lambda i: (0, 0, 0)))
    args.append(packed["vecs"])
    in_specs.append(pl.BlockSpec(packed["vecs"].shape, lambda i: (0, 0)))
    if not meta["fold_last"]:
        args += [packed["w_last"], packed["b_last"]]
        in_specs += [pl.BlockSpec(packed["w_last"].shape, lambda i: (0, 0)),
                     pl.BlockSpec(packed["b_last"].shape, lambda i: (0, 0))]

    kernel = functools.partial(_mlp_kernel, meta)
    out = pl.pallas_call(
        kernel,
        out_shape=jax.ShapeDtypeStruct((padded, nb_out), jnp.float32),
        grid=(padded // tb,),
        in_specs=in_specs,
        out_specs=pl.BlockSpec((tb, nb_out), lambda i: (i, 0)),
        compiler_params=pltpu.CompilerParams(dimension_semantics=("parallel",)),
    )(*args)
    return out[:batch]


def init_params(key, nb_inputs, nb_outputs, nb_layers, hidden_size):
    """Deterministic synthetic init mimicking the module's parameter shapes / init."""
    params = {}
    dims_in = [nb_inputs] + [hidden_size] * nb_layers
    for l, d_in in enumerate(dims_in):
        key, kw, kb = jax.random.split(key, 3)
        bound = 1.0 / jnp.sqrt(d_in)
        w = jax.random.uniform(kw, (d_in, hidden_size), jnp.float32, -bound, bound)
        b = jax.random.uniform(kb, (1, hidden_size), jnp.float32, -bound, bound)
        gamma = jnp.ones((1, hidden_size), jnp.float32)   # nn.LayerNorm default weight
        beta = jnp.zeros((1, hidden_size), jnp.float32)   # nn.LayerNorm default bias
        params[f"block{l}"] = (w, b, gamma, beta)
    key, kw = jax.random.split(key)
    bound = 1.0 / jnp.sqrt(hidden_size)
    params["w_last"] = jax.random.uniform(
        kw, (hidden_size, nb_outputs), jnp.float32, -bound, bound)
    params["b_last"] = jnp.zeros((1, nb_outputs), jnp.float32)  # last_layer.bias.data.zero_()
    return params


def reference_forward(x, params, nb_layers):
    """Pure-JAX reference (torch-style LayerNorm) for the correctness check."""
    h = x
    for l in range(nb_layers + 1):
        w, b, g, be = params[f"block{l}"]
        h = h @ w + b
        mu = jnp.mean(h, axis=-1, keepdims=True)
        var = jnp.mean((h - mu) ** 2, axis=-1, keepdims=True)  # biased var, like torch LN
        h = (h - mu) / jnp.sqrt(var + _LN_EPS) * g + be
        h = jnp.maximum(h, 0.0)
    return h @ params["w_last"] + params["b_last"]


if __name__ == "__main__":
    nb_inputs = 32
    nb_outputs = 8
    nb_layers = 2       # true number of hidden layers is nb_layers + 1 = 3
    hidden_size = 32
    batch = 8

    key = jax.random.PRNGKey(0)
    key, kx = jax.random.split(key)
    x = jax.random.normal(kx, (batch, nb_inputs), jnp.float32)
    params = init_params(key, nb_inputs, nb_outputs, nb_layers, hidden_size)

    # Pack once (hoisted out of the per-call path), then run the kernel.
    packed, meta = pack_params(params, nb_layers)
    out = mlp_forward(x, packed, meta)
    out = jax.block_until_ready(out)

    ref = reference_forward(x, params, nb_layers)
    assert out.shape == (batch, nb_outputs)
    assert jnp.allclose(out, ref, atol=1e-5, rtol=1e-4)

    print("KERNEL_OK")
</pallas_src>

<mosaic_0001>
module attributes {stable_mosaic.version = 11 : i64} {
  func.func @_mlp_kernel(%arg0: i32, %arg1: memref<8x32xf32, #tpu.memory_space<vmem>>, %arg2: memref<4x32x32xf32, #tpu.memory_space<vmem>>, %arg3: memref<10x32xf32, #tpu.memory_space<vmem>>, %arg4: memref<8x8xf32, #tpu.memory_space<vmem>>) attributes {dimension_semantics = [#tpu.dimension_semantics<parallel>], iteration_bounds = array<i64: 1>, scalar_prefetch = 0 : i64, scratch_operands = 0 : i64, tpu.core_type = #tpu.core_type<tc>, window_params = [{transform_indices = @transform_0, window_bounds = array<i64: 8, 32>}, {pipeline_mode = #tpu.pipeline_mode<synchronous>, transform_indices = @transform_1, window_bounds = array<i64: 4, 32, 32>}, {pipeline_mode = #tpu.pipeline_mode<synchronous>, transform_indices = @transform_2, window_bounds = array<i64: 10, 32>}, {transform_indices = @transform_3, window_bounds = array<i64: 8, 8>}]} {
    %c0 = arith.constant 0 : index
    %c0_0 = arith.constant 0 : index
    %0 = vector.load %arg1[%c0, %c0_0] : memref<8x32xf32, #tpu.memory_space<vmem>>, vector<8x32xf32>
    %c0_1 = arith.constant 0 : index
    %c0_2 = arith.constant 0 : index
    %c0_3 = arith.constant 0 : index
    %1 = vector.load %arg2[%c0_1, %c0_2, %c0_3] : memref<4x32x32xf32, #tpu.memory_space<vmem>>, vector<1x32x32xf32>
    %2 = vector.shape_cast %1 : vector<1x32x32xf32> to vector<32x32xf32>
    %c0_4 = arith.constant 0 : index
    %c0_5 = arith.constant 0 : index
    %3 = vector.load %arg3[%c0_4, %c0_5] : memref<10x32xf32, #tpu.memory_space<vmem>>, vector<1x32xf32>
    %c1 = arith.constant 1 : index
    %c0_6 = arith.constant 0 : index
    %4 = vector.load %arg3[%c1, %c0_6] : memref<10x32xf32, #tpu.memory_space<vmem>>, vector<1x32xf32>
    %c2 = arith.constant 2 : index
    %c0_7 = arith.constant 0 : index
    %5 = vector.load %arg3[%c2, %c0_7] : memref<10x32xf32, #tpu.memory_space<vmem>>, vector<1x32xf32>
    %cst = arith.constant dense<0.000000e+00> : vector<8x32xf32>
    %6 = tpu.matmul %0, %2, %cst {dimension_numbers = #tpu.dot_dimension_numbers<[1], [0], [0], [1], [0, 0, 1, 1], [], []>} : vector<8x32xf32>, vector<32x32xf32>, vector<8x32xf32> -> vector<8x32xf32>
    %7 = vector.broadcast %3 : vector<1x32xf32> to vector<8x32xf32>
    %8 = arith.addf %6, %7 : vector<8x32xf32>
    %cst_8 = arith.constant dense<0.000000e+00> : vector<8xf32>
    %9 = vector.multi_reduction <add>, %8, %cst_8 [1] : vector<8x32xf32> to vector<8xf32>
    %10 = vector.shape_cast %9 : vector<8xf32> to vector<8x1xf32>
    %cst_9 = arith.constant 3.200000e+01 : f32
    %11 = vector.broadcast %cst_9 : f32 to vector<8x1xf32>
    %12 = arith.divf %10, %11 : vector<8x1xf32>
    %13 = vector.broadcast %12 : vector<8x1xf32> to vector<8x32xf32>
    %14 = arith.subf %8, %13 : vector<8x32xf32>
    %15 = arith.mulf %14, %14 : vector<8x32xf32>
    %cst_10 = arith.constant dense<0.000000e+00> : vector<8xf32>
    %16 = vector.multi_reduction <add>, %15, %cst_10 [1] : vector<8x32xf32> to vector<8xf32>
    %17 = vector.shape_cast %16 : vector<8xf32> to vector<8x1xf32>
    %cst_11 = arith.constant 3.200000e+01 : f32
    %18 = vector.broadcast %cst_11 : f32 to vector<8x1xf32>
    %19 = arith.divf %17, %18 : vector<8x1xf32>
    %20 = vector.broadcast %12 : vector<8x1xf32> to vector<8x32xf32>
    %21 = arith.subf %8, %20 : vector<8x32xf32>
    %cst_12 = arith.constant 9.99999974E-6 : f32
    %22 = vector.broadcast %cst_12 : f32 to vector<8x1xf32>
    %23 = arith.addf %19, %22 : vector<8x1xf32>
    %24 = math.rsqrt %23 : vector<8x1xf32>
    %25 = vector.broadcast %24 : vector<8x1xf32> to vector<8x32xf32>
    %26 = arith.mulf %21, %25 : vector<8x32xf32>
    %27 = vector.broadcast %4 : vector<1x32xf32> to vector<8x32xf32>
    %28 = arith.mulf %26, %27 : vector<8x32xf32>
    %29 = vector.broadcast %5 : vector<1x32xf32> to vector<8x32xf32>
    %30 = arith.addf %28, %29 : vector<8x32xf32>
    %cst_13 = arith.constant 0.000000e+00 : f32
    %31 = vector.broadcast %cst_13 : f32 to vector<8x32xf32>
    %32 = arith.maximumf %30, %31 : vector<8x32xf32>
    %c1_14 = arith.constant 1 : index
    %c0_15 = arith.constant 0 : index
    %c0_16 = arith.constant 0 : index
    %33 = vector.load %arg2[%c1_14, %c0_15, %c0_16] : memref<4x32x32xf32, #tpu.memory_space<vmem>>, vector<1x32x32xf32>
    %34 = vector.shape_cast %33 : vector<1x32x32xf32> to vector<32x32xf32>
    %c3 = arith.constant 3 : index
    %c0_17 = arith.constant 0 : index
    %35 = vector.load %arg3[%c3, %c0_17] : memref<10x32xf32, #tpu.memory_space<vmem>>, vector<1x32xf32>
    %c4 = arith.constant 4 : index
    %c0_18 = arith.constant 0 : index
    %36 = vector.load %arg3[%c4, %c0_18] : memref<10x32xf32, #tpu.memory_space<vmem>>, vector<1x32xf32>
    %c5 = arith.constant 5 : index
    %c0_19 = arith.constant 0 : index
    %37 = vector.load %arg3[%c5, %c0_19] : memref<10x32xf32, #tpu.memory_space<vmem>>, vector<1x32xf32>
    %cst_20 = arith.constant dense<0.000000e+00> : vector<8x32xf32>
    %38 = tpu.matmul %32, %34, %cst_20 {dimension_numbers = #tpu.dot_dimension_numbers<[1], [0], [0], [1], [0, 0, 1, 1], [], []>} : vector<8x32xf32>, vector<32x32xf32>, vector<8x32xf32> -> vector<8x32xf32>
    %39 = vector.broadcast %35 : vector<1x32xf32> to vector<8x32xf32>
    %40 = arith.addf %38, %39 : vector<8x32xf32>
    %cst_21 = arith.constant dense<0.000000e+00> : vector<8xf32>
    %41 = vector.multi_reduction <add>, %40, %cst_21 [1] : vector<8x32xf32> to vector<8xf32>
    %42 = vector.shape_cast %41 : vector<8xf32> to vector<8x1xf32>
    %cst_22 = arith.constant 3.200000e+01 : f32
    %43 = vector.broadcast %cst_22 : f32 to vector<8x1xf32>
    %44 = arith.divf %42, %43 : vector<8x1xf32>
    %45 = vector.broadcast %44 : vector<8x1xf32> to vector<8x32xf32>
    %46 = arith.subf %40, %45 : vector<8x32xf32>
    %47 = arith.mulf %46, %46 : vector<8x32xf32>
    %cst_23 = arith.constant dense<0.000000e+00> : vector<8xf32>
    %48 = vector.multi_reduction <add>, %47, %cst_23 [1] : vector<8x32xf32> to vector<8xf32>
    %49 = vector.shape_cast %48 : vector<8xf32> to vector<8x1xf32>
    %cst_24 = arith.constant 3.200000e+01 : f32
    %50 = vector.broadcast %cst_24 : f32 to vector<8x1xf32>
    %51 = arith.divf %49, %50 : vector<8x1xf32>
    %52 = vector.broadcast %44 : vector<8x1xf32> to vector<8x32xf32>
    %53 = arith.subf %40, %52 : vector<8x32xf32>
    %cst_25 = arith.constant 9.99999974E-6 : f32
    %54 = vector.broadcast %cst_25 : f32 to vector<8x1xf32>
    %55 = arith.addf %51, %54 : vector<8x1xf32>
    %56 = math.rsqrt %55 : vector<8x1xf32>
    %57 = vector.broadcast %56 : vector<8x1xf32> to vector<8x32xf32>
    %58 = arith.mulf %53, %57 : vector<8x32xf32>
    %59 = vector.broadcast %36 : vector<1x32xf32> to vector<8x32xf32>
    %60 = arith.mulf %58, %59 : vector<8x32xf32>
    %61 = vector.broadcast %37 : vector<1x32xf32> to vector<8x32xf32>
    %62 = arith.addf %60, %61 : vector<8x32xf32>
    %cst_26 = arith.constant 0.000000e+00 : f32
    %63 = vector.broadcast %cst_26 : f32 to vector<8x32xf32>
    %64 = arith.maximumf %62, %63 : vector<8x32xf32>
    %c2_27 = arith.constant 2 : index
    %c0_28 = arith.constant 0 : index
    %c0_29 = arith.constant 0 : index
    %65 = vector.load %arg2[%c2_27, %c0_28, %c0_29] : memref<4x32x32xf32, #tpu.memory_space<vmem>>, vector<1x32x32xf32>
    %66 = vector.shape_cast %65 : vector<1x32x32xf32> to vector<32x32xf32>
    %c6 = arith.constant 6 : index
    %c0_30 = arith.constant 0 : index
    %67 = vector.load %arg3[%c6, %c0_30] : memref<10x32xf32, #tpu.memory_space<vmem>>, vector<1x32xf32>
    %c7 = arith.constant 7 : index
    %c0_31 = arith.constant 0 : index
    %68 = vector.load %arg3[%c7, %c0_31] : memref<10x32xf32, #tpu.memory_space<vmem>>, vector<1x32xf32>
    %c8 = arith.constant 8 : index
    %c0_32 = arith.constant 0 : index
    %69 = vector.load %arg3[%c8, %c0_32] : memref<10x32xf32, #tpu.memory_space<vmem>>, vector<1x32xf32>
    %cst_33 = arith.constant dense<0.000000e+00> : vector<8x32xf32>
    %70 = tpu.matmul %64, %66, %cst_33 {dimension_numbers = #tpu.dot_dimension_numbers<[1], [0], [0], [1], [0, 0, 1, 1], [], []>} : vector<8x32xf32>, vector<32x32xf32>, vector<8x32xf32> -> vector<8x32xf32>
    %71 = vector.broadcast %67 : vector<1x32xf32> to vector<8x32xf32>
    %72 = arith.addf %70, %71 : vector<8x32xf32>
    %cst_34 = arith.constant dense<0.000000e+00> : vector<8xf32>
    %73 = vector.multi_reduction <add>, %72, %cst_34 [1] : vector<8x32xf32> to vector<8xf32>
    %74 = vector.shape_cast %73 : vector<8xf32> to vector<8x1xf32>
    %cst_35 = arith.constant 3.200000e+01 : f32
    %75 = vector.broadcast %cst_35 : f32 to vector<8x1xf32>
    %76 = arith.divf %74, %75 : vector<8x1xf32>
    %77 = vector.broadcast %76 : vector<8x1xf32> to vector<8x32xf32>
    %78 = arith.subf %72, %77 : vector<8x32xf32>
    %79 = arith.mulf %78, %78 : vector<8x32xf32>
    %cst_36 = arith.constant dense<0.000000e+00> : vector<8xf32>
    %80 = vector.multi_reduction <add>, %79, %cst_36 [1] : vector<8x32xf32> to vector<8xf32>
    %81 = vector.shape_cast %80 : vector<8xf32> to vector<8x1xf32>
    %cst_37 = arith.constant 3.200000e+01 : f32
    %82 = vector.broadcast %cst_37 : f32 to vector<8x1xf32>
    %83 = arith.divf %81, %82 : vector<8x1xf32>
    %84 = vector.broadcast %76 : vector<8x1xf32> to vector<8x32xf32>
    %85 = arith.subf %72, %84 : vector<8x32xf32>
    %cst_38 = arith.constant 9.99999974E-6 : f32
    %86 = vector.broadcast %cst_38 : f32 to vector<8x1xf32>
    %87 = arith.addf %83, %86 : vector<8x1xf32>
    %88 = math.rsqrt %87 : vector<8x1xf32>
    %89 = vector.broadcast %88 : vector<8x1xf32> to vector<8x32xf32>
    %90 = arith.mulf %85, %89 : vector<8x32xf32>
    %91 = vector.broadcast %68 : vector<1x32xf32> to vector<8x32xf32>
    %92 = arith.mulf %90, %91 : vector<8x32xf32>
    %93 = vector.broadcast %69 : vector<1x32xf32> to vector<8x32xf32>
    %94 = arith.addf %92, %93 : vector<8x32xf32>
    %cst_39 = arith.constant 0.000000e+00 : f32
    %95 = vector.broadcast %cst_39 : f32 to vector<8x32xf32>
    %96 = arith.maximumf %94, %95 : vector<8x32xf32>
    %c3_40 = arith.constant 3 : index
    %c0_41 = arith.constant 0 : index
    %c0_42 = arith.constant 0 : index
    %97 = vector.load %arg2[%c3_40, %c0_41, %c0_42] : memref<4x32x32xf32, #tpu.memory_space<vmem>>, vector<1x32x32xf32>
    %98 = vector.shape_cast %97 : vector<1x32x32xf32> to vector<32x32xf32>
    %c9 = arith.constant 9 : index
    %c0_43 = arith.constant 0 : index
    %99 = vector.load %arg3[%c9, %c0_43] : memref<10x32xf32, #tpu.memory_space<vmem>>, vector<1x32xf32>
    %cst_44 = arith.constant dense<0.000000e+00> : vector<8x32xf32>
    %100 = tpu.matmul %96, %98, %cst_44 {dimension_numbers = #tpu.dot_dimension_numbers<[1], [0], [0], [1], [0, 0, 1, 1], [], []>} : vector<8x32xf32>, vector<32x32xf32>, vector<8x32xf32> -> vector<8x32xf32>
    %101 = vector.broadcast %99 : vector<1x32xf32> to vector<8x32xf32>
    %102 = arith.addf %100, %101 : vector<8x32xf32>
    %103 = vector.extract_strided_slice %102 {offsets = [0, 0], sizes = [8, 8], strides = [1, 1]} : vector<8x32xf32> to vector<8x8xf32>
    %c0_45 = arith.constant 0 : index
    %c0_46 = arith.constant 0 : index
    %104 = vector.load %arg4[%c0_45, %c0_46] : memref<8x8xf32, #tpu.memory_space<vmem>>, vector<8x8xf32>
    tpu.vector_store %arg4[%c0_45, %c0_46], %103 {strides = array<i32>} : memref<8x8xf32, #tpu.memory_space<vmem>>, vector<8x8xf32>,
    return
  }
  func.func @transform_0(%arg0: i32) -> (i32, i32) {
    %c0_i32 = arith.constant 0 : i32
    %c0_i32_0 = arith.constant 0 : i32
    return %arg0, %c0_i32 : i32, i32
  }
  func.func @transform_1(%arg0: i32) -> (i32, i32, i32) {
    %c0_i32 = arith.constant 0 : i32
    %c0_i32_0 = arith.constant 0 : i32
    %c0_i32_1 = arith.constant 0 : i32
    %c0_i32_2 = arith.constant 0 : i32
    return %c0_i32, %c0_i32_0, %c0_i32_1 : i32, i32, i32
  }
  func.func @transform_2(%arg0: i32) -> (i32, i32) {
    %c0_i32 = arith.constant 0 : i32
    %c0_i32_0 = arith.constant 0 : i32
    %c0_i32_1 = arith.constant 0 : i32
    return %c0_i32, %c0_i32_0 : i32, i32
  }
  func.func @transform_3(%arg0: i32) -> (i32, i32) {
    %c0_i32 = arith.constant 0 : i32
    %c0_i32_0 = arith.constant 0 : i32
    return %arg0, %c0_i32 : i32, i32
  }
}

</mosaic_0001>

<llo_original>
// kernel: tpu_custom_call.1
$region0: #{tpu_custom_call.1}
  #allocation0 [shape = 'u32[]', space=smem, size = 0x4, offset = 0x4, fixed_abs, tag = 'smem constant byte address 0x4 - core index']
  #allocation1 [shape = 'u32[72,128]{1,0:T(1,128)}', space=vmem, size = 0x9000, scoped, tag = 'internal scratch']
  %s0 = inlined_call_operand.hbm [shape: f32[8,32], index: 0, kind: input, shape index: {}]
  %s1 = inlined_call_operand.hbm [shape: f32[4,32,32], index: 1, kind: input, shape index: {}]
  %s2 = inlined_call_operand.hbm [shape: f32[10,32], index: 2, kind: input, shape index: {}]
  %s3 = inlined_call_operand.hbm [shape: f32[8,8], index: 3, kind: output, shape index: {}]
  %s4 = sld [smem:[#allocation0]]
  $region34: #{tpu_custom_call.1} parent=0
    _
  %s6 = ssub.s32 1, %s4
  %s7 = scalar_select 0, %s6, %s4
  $region1: #{tpu_custom_call.1} parent=0
    #allocation2 [shape = 'u8[4096]{0}', space=vmem, size = 0x1000, scoped, tag = 'input window, operand 0, single buffered']
    #allocation3 [shape = 's32[1]{0}', space=sflag, size = 0x4, scoped, tag = 'scoped memory for tpu_custom_call.1']
    #allocation4 [shape = 's32[1]{0}', space=sflag, size = 0x4, scoped, tag = 'scoped memory for tpu_custom_call.1']
    #allocation5 [shape = 'u8[65536]{0}', space=vmem, size = 0x10000, scoped, tag = 'input window, operand 1, single buffered']
    #allocation6 [shape = 's32[1]{0}', space=sflag, size = 0x4, scoped, tag = 'scoped memory for tpu_custom_call.1']
    #allocation7 [shape = 'u8[8192]{0}', space=vmem, size = 0x2000, scoped, tag = 'input window, operand 2, single buffered']
    #allocation8 [shape = 'u8[4096]{0}', space=vmem, size = 0x1000, scoped, tag = 'output window, operand 0, single buffered']
    %8 = vsyncpa [#allocation3], 0
    %9 = vsyncpa [#allocation6], 0
    %10 = vsyncpa [#allocation4], 0
    // Predicated region
    $region2: #{tpu_custom_call.1} parent=1 // pred_check
      _
    $region3: #{tpu_custom_call.1} parent=1 // pred_check_branch
      %12 = sbr.rel (0) target = $region5
    $region4: #{tpu_custom_call.1} parent=1 // pred_region
      %14 = vsyncadd [#allocation3], 0
      %s16 = sshll.u32 %s0, 4
      %s17 = int_to_ptr.hbm [resolvable:$true] %s16
      %s18 = sshll.u32 [#allocation2], 4
      %s19 = int_to_ptr.vmem [resolvable:$true] %s18
      %21 = dma.hbm_to_vmem [thread:$0]  %s17, 128, %s19, [#allocation3]
    $region5: #{tpu_custom_call.1} parent=1 // pred_fallthru
      _
    // Predicated region
    $region6: #{tpu_custom_call.1} parent=1 // pred_check
      _
    $region7: #{tpu_custom_call.1} parent=1 // pred_check_branch
      %23 = sbr.rel (0) target = $region9
    $region8: #{tpu_custom_call.1} parent=1 // pred_region
      %25 = vsyncadd [#allocation6], 0
      %s26 = sshll.u32 %s1, 4
      %s27 = int_to_ptr.hbm [resolvable:$true] %s26
      %s28 = sshll.u32 [#allocation5], 4
      %s29 = int_to_ptr.vmem [resolvable:$true] %s28
      %34 = dma.hbm_to_vmem [thread:$0]  %s27, 2048, %s29, [#allocation6], 128, 128, 8
    $region9: #{tpu_custom_call.1} parent=1 // pred_fallthru
      _
    // Predicated region
    $region10: #{tpu_custom_call.1} parent=1 // pred_check
      _
    $region11: #{tpu_custom_call.1} parent=1 // pred_check_branch
      %36 = sbr.rel (0) target = $region13
    $region12: #{tpu_custom_call.1} parent=1 // pred_region
      %38 = vsyncadd [#allocation6], 0
      %s39 = sshll.u32 %s2, 4
      %s40 = int_to_ptr.hbm [resolvable:$true] %s39
      %s41 = sshll.u32 [#allocation7], 4
      %s42 = int_to_ptr.vmem [resolvable:$true] %s41
      %47 = dma.hbm_to_vmem [thread:$0]  %s40, 256, %s42, [#allocation6], 128, 128, 8
    $region13: #{tpu_custom_call.1} parent=1 // pred_fallthru
      _
    // Predicated region
    $region14: #{tpu_custom_call.1} parent=1 // pred_check
      _
    $region15: #{tpu_custom_call.1} parent=1 // pred_check_branch
      %49 = sbr.rel (0) target = $region17
    $region16: #{tpu_custom_call.1} parent=1 // pred_region
      %51 = dma.done [#allocation3], 128
    $region17: #{tpu_custom_call.1} parent=1 // pred_fallthru
      _
    // Predicated region
    $region18: #{tpu_custom_call.1} parent=1 // pred_check
      _
    $region19: #{tpu_custom_call.1} parent=1 // pred_check_branch
      %53 = sbr.rel (0) target = $region21
    $region20: #{tpu_custom_call.1} parent=1 // pred_region
      %55 = dma.done [#allocation6], 2048
    $region21: #{tpu_custom_call.1} parent=1 // pred_fallthru
      _
    // Predicated region
    $region22: #{tpu_custom_call.1} parent=1 // pred_check
      _
    $region23: #{tpu_custom_call.1} parent=1 // pred_check_branch
      %57 = sbr.rel (0) target = $region25
    $region24: #{tpu_custom_call.1} parent=1 // pred_region
      %59 = dma.done [#allocation6], 256
    $region25: #{tpu_custom_call.1} parent=1 // pred_fallthru
      _
    %v60 = vld [vmem:[#allocation2] sm:$0xff]
    %v61 = vld [vmem:[#allocation5] sm:$0xff]
    %v62 = vld [vmem:[#allocation5 + $0x8] sm:$0xff]
    %v63 = vld [vmem:[#allocation5 + $0x10] sm:$0xff]
    %v64 = vld [vmem:[#allocation5 + $0x18] sm:$0xff]
    %v65 = vld [vmem:[#allocation7] sm:$0x1]
    %v66 = vld [vmem:[#allocation7 + $0x1] sm:$0x1]
    %v67 = vld [vmem:[#allocation7 + $0x2] sm:$0x1]
    %v68 = vperm.slane %v65, 0
    %vm69 = vcmask 261120
    %v71 = vsel %vm69, %v60, 0
    %73 = vmatpush.msra.mxu0 0.0
    %74 = vmatpush.msra.mxu0 0.0
    %75 = vmatpush.msra.mxu0 0.0
    %76 = vmatpush.msra.mxu0 0.0
    %77 = vmatpush.msra.mxu0 0.0
    %78 = vmatpush.msra.mxu0 0.0
    %79 = vmatpush.msra.mxu0 0.0
    %80 = vmatpush.msra.mxu0 0.0
    %81 = vmatpush.msra.mxu0 0.0
    %82 = vmatpush.msra.mxu0 0.0
    %83 = vmatpush.msra.mxu0 0.0
    %84 = vmatpush.msra.mxu0 0.0
    %85 = vmatpush.msra.mxu0 %v64
    %86 = vmatpush.msra.mxu0 %v63
    %87 = vmatpush.msra.mxu0 %v62
    %88 = vmatpush.msra.mxu0 %v61
    %89 = vmatmul.f32.gmra.mxu0 %v71
    %v90 = vpop.f32.mrf.mxu0
    %v91 = vadd.f32 %v68, %v90
    %92 = vdwg.mxu0
    %v93 = vsel %vm69, %v91, 0.0
    %94 = vadd.xlane.f32.xlu0 %v93
    %v95 = vpop.xlane.xlu0 %94
    %v96 = vrcp.pop 32.0
    %v97 = vmul.f32 32.0, %v96
    %v98 = vsub.f32 1.0, %v97
    %v99 = vmul.f32 %v96, %v98
    %v100 = vadd.f32 %v96, %v99
    %vm101 = vweird.f32 %v96
    %v102 = vsel %vm101, %v96, %v100
    %v103 = vmul.f32 %v95, %v102
    %v104 = vsub.f32 %v91, %v103
    %v105 = vmul.f32 %v104, %v104
    %v106 = vsel %vm69, %v105, 0.0
    %107 = vadd.xlane.f32.xlu0 %v106
    %v108 = vpop.xlane.xlu0 %107
    %v109 = vmul.f32 %v108, %v102
    %v110 = vadd.f32 %v109, 1e-05
    %v111 = vrsqrt.pop %v110
    %v112 = vmul.f32 %v111, %v110
    %v113 = vmul.f32 %v112, %v111
    %v114 = vmul.f32 0.5, %v113
    %v115 = vsub.f32 1.5, %v114
    %v116 = vmul.f32 %v111, %v115
    %vm117 = vweird.f32 %v110
    %vm118 = vweird.f32 %v111
    %vm119 = vmor %vm117, %vm118
    %v120 = vsel %vm119, %v111, %v116
    %v121 = vmul.f32 %v104, %v120
    %v122 = vperm.slane %v66, 0
    %v123 = vmul.f32 %v121, %v122
    %v124 = vperm.slane %v67, 0
    %v125 = vadd.f32 %v123, %v124
    %v126 = vmax.f32 %v125, 0.0
    %s127 = scalar_lea.vmem [#allocation5], 32
    %v128 = vld [vmem:[%s127] sm:$0xff]
    %v129 = vld [vmem:[%s127 + $0x8] sm:$0xff]
    %v130 = vld [vmem:[%s127 + $0x10] sm:$0xff]
    %v131 = vld [vmem:[%s127 + $0x18] sm:$0xff]
    %v132 = vld [vmem:[#allocation7 + $0x3] sm:$0x1]
    %v133 = vld [vmem:[#allocation7 + $0x4] sm:$0x1]
    %v134 = vld [vmem:[#allocation7 + $0x5] sm:$0x1]
    %v135 = vperm.slane %v132, 0
    %v137 = vsel %vm69, %v126, 0
    %139 = vmatpush.msra.mxu0 0.0
    %140 = vmatpush.msra.mxu0 0.0
    %141 = vmatpush.msra.mxu0 0.0
    %142 = vmatpush.msra.mxu0 0.0
    %143 = vmatpush.msra.mxu0 0.0
    %144 = vmatpush.msra.mxu0 0.0
    %145 = vmatpush.msra.mxu0 0.0
    %146 = vmatpush.msra.mxu0 0.0
    %147 = vmatpush.msra.mxu0 0.0
    %148 = vmatpush.msra.mxu0 0.0
    %149 = vmatpush.msra.mxu0 0.0
    %150 = vmatpush.msra.mxu0 0.0
    %151 = vmatpush.msra.mxu0 %v131
    %152 = vmatpush.msra.mxu0 %v130
    %153 = vmatpush.msra.mxu0 %v129
    %154 = vmatpush.msra.mxu0 %v128
    %155 = vmatmul.f32.gmra.mxu0 %v137
    %v156 = vpop.f32.mrf.mxu0
    %v157 = vadd.f32 %v135, %v156
    %158 = vdwg.mxu0
    %v159 = vsel %vm69, %v157, 0.0
    %160 = vadd.xlane.f32.xlu0 %v159
    %v161 = vpop.xlane.xlu0 %160
    %v162 = vmul.f32 %v161, %v102
    %v163 = vsub.f32 %v157, %v162
    %v164 = vmul.f32 %v163, %v163
    %v165 = vsel %vm69, %v164, 0.0
    %166 = vadd.xlane.f32.xlu0 %v165
    %v167 = vpop.xlane.xlu0 %166
    %v168 = vmul.f32 %v167, %v102
    %v169 = vadd.f32 %v168, 1e-05
    %v170 = vrsqrt.pop %v169
    %v171 = vmul.f32 %v170, %v169
    %v172 = vmul.f32 %v171, %v170
    %v173 = vmul.f32 0.5, %v172
    %v174 = vsub.f32 1.5, %v173
    %v175 = vmul.f32 %v170, %v174
    %vm176 = vweird.f32 %v169
    %vm177 = vweird.f32 %v170
    %vm178 = vmor %vm176, %vm177
    %v179 = vsel %vm178, %v170, %v175
    %v180 = vmul.f32 %v163, %v179
    %v181 = vperm.slane %v133, 0
    %v182 = vmul.f32 %v180, %v181
    %v183 = vperm.slane %v134, 0
    %v184 = vadd.f32 %v182, %v183
    %v185 = vmax.f32 %v184, 0.0
    %s186 = scalar_lea.vmem [#allocation5], 64
    %v187 = vld [vmem:[%s186] sm:$0xff]
    %v188 = vld [vmem:[%s186 + $0x8] sm:$0xff]
    %v189 = vld [vmem:[%s186 + $0x10] sm:$0xff]
    %v190 = vld [vmem:[%s186 + $0x18] sm:$0xff]
    %v191 = vld [vmem:[#allocation7 + $0x6] sm:$0x1]
    %v192 = vld [vmem:[#allocation7 + $0x7] sm:$0x1]
    %v193 = vld [vmem:[#allocation7 + $0x8] sm:$0x1]
    %v194 = vperm.slane %v191, 0
    %v196 = vsel %vm69, %v185, 0
    %198 = vmatpush.msra.mxu0 0.0
    %199 = vmatpush.msra.mxu0 0.0
    %200 = vmatpush.msra.mxu0 0.0
    %201 = vmatpush.msra.mxu0 0.0
    %202 = vmatpush.msra.mxu0 0.0
    %203 = vmatpush.msra.mxu0 0.0
    %204 = vmatpush.msra.mxu0 0.0
    %205 = vmatpush.msra.mxu0 0.0
    %206 = vmatpush.msra.mxu0 0.0
    %207 = vmatpush.msra.mxu0 0.0
    %208 = vmatpush.msra.mxu0 0.0
    %209 = vmatpush.msra.mxu0 0.0
    %210 = vmatpush.msra.mxu0 %v190
    %211 = vmatpush.msra.mxu0 %v189
    %212 = vmatpush.msra.mxu0 %v188
    %213 = vmatpush.msra.mxu0 %v187
    %214 = vmatmul.f32.gmra.mxu0 %v196
    %v215 = vpop.f32.mrf.mxu0
    %v216 = vadd.f32 %v194, %v215
    %217 = vdwg.mxu0
    %v218 = vsel %vm69, %v216, 0.0
    %219 = vadd.xlane.f32.xlu0 %v218
    %v220 = vpop.xlane.xlu0 %219
    %v221 = vmul.f32 %v220, %v102
    %v222 = vsub.f32 %v216, %v221
    %v223 = vmul.f32 %v222, %v222
    %v224 = vsel %vm69, %v223, 0.0
    %225 = vadd.xlane.f32.xlu0 %v224
    %v226 = vpop.xlane.xlu0 %225
    %v227 = vmul.f32 %v226, %v102
    %v228 = vadd.f32 %v227, 1e-05
    %v229 = vrsqrt.pop %v228
    %v230 = vmul.f32 %v229, %v228
    %v231 = vmul.f32 %v230, %v229
    %v232 = vmul.f32 0.5, %v231
    %v233 = vsub.f32 1.5, %v232
    %v234 = vmul.f32 %v229, %v233
    %vm235 = vweird.f32 %v228
    %vm236 = vweird.f32 %v229
    %vm237 = vmor %vm235, %vm236
    %v238 = vsel %vm237, %v229, %v234
    %v239 = vmul.f32 %v222, %v238
    %v240 = vperm.slane %v192, 0
    %v241 = vmul.f32 %v239, %v240
    %v242 = vperm.slane %v193, 0
    %v243 = vadd.f32 %v241, %v242
    %v244 = vmax.f32 %v243, 0.0
    %s245 = scalar_lea.vmem [#allocation5], 96
    %v246 = vld [vmem:[%s245] sm:$0xff]
    %v247 = vld [vmem:[%s245 + $0x8] sm:$0xff]
    %v248 = vld [vmem:[%s245 + $0x10] sm:$0xff]
    %v249 = vld [vmem:[%s245 + $0x18] sm:$0xff]
    %v250 = vld [vmem:[#allocation7 + $0x9] sm:$0x1]
    %v251 = vperm.slane %v250, 0
    %v253 = vsel %vm69, %v244, 0
    %255 = vmatpush.msra.mxu0 0.0
    %256 = vmatpush.msra.mxu0 0.0
    %257 = vmatpush.msra.mxu0 0.0
    %258 = vmatpush.msra.mxu0 0.0
    %259 = vmatpush.msra.mxu0 0.0
    %260 = vmatpush.msra.mxu0 0.0
    %261 = vmatpush.msra.mxu0 0.0
    %262 = vmatpush.msra.mxu0 0.0
    %263 = vmatpush.msra.mxu0 0.0
    %264 = vmatpush.msra.mxu0 0.0
    %265 = vmatpush.msra.mxu0 0.0
    %266 = vmatpush.msra.mxu0 0.0
    %267 = vmatpush.msra.mxu0 %v249
    %268 = vmatpush.msra.mxu0 %v248
    %269 = vmatpush.msra.mxu0 %v247
    %270 = vmatpush.msra.mxu0 %v246
    %271 = vmatmul.f32.gmra.mxu0 %v253
    %v272 = vpop.f32.mrf.mxu0
    %v273 = vadd.f32 %v251, %v272
    %274 = vdwg.mxu0
    %vm275 = vcmask 64512
    %276 = vst.msk [vmem:[#allocation8] sm:$0xff] %vm275, %v273
    // Predicated region
    $region26: #{tpu_custom_call.1} parent=1 // pred_check
      _
    $region27: #{tpu_custom_call.1} parent=1 // pred_check_branch
      %278 = sbr.rel (0) target = $region29
    $region28: #{tpu_custom_call.1} parent=1 // pred_region
      %280 = vsyncadd [#allocation4], 0
      %s282 = sshll.u32 [#allocation8], 4
      %s283 = int_to_ptr.vmem [resolvable:$true] %s282
      %s284 = sshll.u32 %s3, 4
      %s285 = int_to_ptr.hbm [resolvable:$true] %s284
      %287 = dma.vmem_to_hbm [thread:$0]  %s283, 128, %s285, [#allocation4]
    $region29: #{tpu_custom_call.1} parent=1 // pred_fallthru
      _
    // Predicated region
    $region30: #{tpu_custom_call.1} parent=1 // pred_check
      _
    $region31: #{tpu_custom_call.1} parent=1 // pred_check_branch
      %289 = sbr.rel (0) target = $region33
    $region32: #{tpu_custom_call.1} parent=1 // pred_region
      %291 = dma.done [#allocation4], 128
    $region33: #{tpu_custom_call.1} parent=1 // pred_fallthru
      _
    %292 = vsyncpa [#allocation3], 1
    %293 = vsyncpa [#allocation6], 1
    %294 = vsyncpa [#allocation4], 1

</llo_original>
